<compile_context>
chip_gen: v6e
topology: v6e:2x2x1
jax: 0.10.0
libtpu: 0.0.40
codegen_flags: <defaults>
</compile_context>

<pallas_src>
import math

import jax
import jax.numpy as jnp
from jax.experimental import pallas as pl
from jax.experimental.pallas import tpu as pltpu

B_BITS = 6
SCALE = float(2 ** (B_BITS - 1))        # 2^(B-1) = 32
INV_SCALE = 1.0 / SCALE

_LANE_CANDIDATES = (2048, 1024, 512, 256, 128)   # lane-dense last dims
_MAX_BLOCK_ELEMS = 2048 * 512                    # ~4 MiB per f32 tile
_VMEM_LIMIT_BYTES = 32 * 1024 * 1024             # safe on v5e / v6e / v7x


def _quantization_kernel(y_ref, o_ref):
    # out = ceil(2^(B-1) * y) / 2^(B-1); compute in f32, store native dtype.
    y = y_ref[...].astype(jnp.float32)
    o_ref[...] = (jnp.ceil(SCALE * y) * INV_SCALE).astype(o_ref.dtype)


def _quantize_ref(x):
    # Plain-JAX semantics (used only for tiny unaligned tails / empty slabs).
    return jnp.ceil(SCALE * x.astype(jnp.float32)) * INV_SCALE


def _dimension_semantics(num_steps: int):
    # On v7x (2 TensorCores) mark the row axis core-parallel so both TCs
    # stream half the rows; elsewhere PARALLEL (megacore no-op, always safe).
    kind = ""
    try:
        kind = jax.devices()[0].device_kind.lower()
    except Exception:  # pragma: no cover - defensive
        pass
    if num_steps >= 2 and ("v7" in kind or "7x" in kind):
        return (pltpu.CORE_PARALLEL,)
    return (pltpu.PARALLEL,)


def _quantize_2d(y2d: jax.Array) -> jax.Array:
    """Stream the quantization kernel over a lane-dense 2-D slab."""
    rows, lane = y2d.shape
    dtype = y2d.dtype
    itemsize = jnp.dtype(dtype).itemsize

    # dtype-aware sublane alignment: 8 (f32), 16 (bf16), 32 (int8/fp8).
    sub_align = max(8, (4 // max(itemsize, 1)) * 8)
    max_block_rows = max(sub_align,
                         (_MAX_BLOCK_ELEMS // lane) // sub_align * sub_align)

    if rows <= sub_align:
        block_rows = rows                      # full dim -> always legal
    else:
        # Aim for >=2 grid steps (keeps both v7x TCs busy), capped by the
        # ~4 MiB per-buffer VMEM budget; partial trailing block is masked.
        half = pl.cdiv(rows, 2)
        block_rows = min(max_block_rows,
                         ((half + sub_align - 1) // sub_align) * sub_align)

    num_steps = pl.cdiv(rows, block_rows)
    n_elems = rows * lane

    return pl.pallas_call(
        _quantization_kernel,
        out_shape=jax.ShapeDtypeStruct((rows, lane), dtype),
        grid_spec=pltpu.PrefetchScalarGridSpec(
            num_scalar_prefetch=0,
            grid=(num_steps,),
            in_specs=[pl.BlockSpec((block_rows, lane), lambda i: (i, 0))],
            out_specs=pl.BlockSpec((block_rows, lane), lambda i: (i, 0)),
        ),
        compiler_params=pltpu.CompilerParams(
            dimension_semantics=_dimension_semantics(num_steps),
            vmem_limit_bytes=_VMEM_LIMIT_BYTES,
        ),
        cost_estimate=pl.CostEstimate(
            flops=2 * n_elems,
            transcendentals=0,
            bytes_accessed=2 * n_elems * itemsize,
        ),
    )(y2d)


def quantization(y: jax.Array) -> jax.Array:
    """Elementwise quantization ceil(32*y)/32 for any shape / dtype."""
    orig_shape = y.shape
    dtype = y.dtype
    total = math.prod(orig_shape)
    if total == 0:
        return y

    # Preferred path: pad-free reshape to a lane-dense (rows, lane) slab.
    lane = next((c for c in _LANE_CANDIDATES if total % c == 0), None)
    if lane is not None:
        out2d = _quantize_2d(y.reshape(total // lane, lane))
        return out2d.reshape(orig_shape)

    # Fallback (element count not a multiple of 128): kernel over the
    # 512-aligned main slab, tiny (<512 element) tail in plain jnp.
    y_flat = y.reshape(total)
    main = (total // 512) * 512
    if main == 0:
        out_flat = _quantize_ref(y_flat).astype(dtype)
    else:
        out_main = _quantize_2d(y_flat[:main].reshape(main // 512, 512))
        out_tail = _quantize_ref(y_flat[main:]).astype(dtype)
        out_flat = jnp.concatenate([out_main.reshape(main), out_tail])
    return out_flat.reshape(orig_shape)


if __name__ == "__main__":
    key = jax.random.PRNGKey(0)
    k1, k2 = jax.random.split(key)

    # Small NCHW input consistent with the PyTorch module's typical use.
    x = jax.random.normal(k1, (2, 4, 16, 16), dtype=jnp.float32)
    out = jax.block_until_ready(quantization(x))
    ref = jnp.ceil(SCALE * x) * INV_SCALE
    assert out.shape == x.shape and out.dtype == x.dtype
    assert jnp.allclose(out, ref, atol=0, rtol=0), "mismatch vs reference"

    # Second (still small) case exercising the multi-step pipelined grid.
    x2 = jax.random.normal(k2, (8, 4, 64, 64), dtype=jnp.float32)
    out2 = jax.block_until_ready(quantization(x2))
    ref2 = jnp.ceil(SCALE * x2) * INV_SCALE
    assert out2.shape == x2.shape and out2.dtype == x2.dtype
    assert jnp.allclose(out2, ref2, atol=0, rtol=0), "mismatch vs reference (2)"

    print("KERNEL_OK")
</pallas_src>

<mosaic_0001>
module attributes {stable_mosaic.version = 11 : i64} {
  func.func @_quantization_kernel(%arg0: i32, %arg1: memref<1x2048xf32, #tpu.memory_space<vmem>>, %arg2: memref<1x2048xf32, #tpu.memory_space<vmem>>) attributes {dimension_semantics = [#tpu.dimension_semantics<parallel>], iteration_bounds = array<i64: 1>, scalar_prefetch = 0 : i64, scratch_operands = 0 : i64, tpu.core_type = #tpu.core_type<tc>, window_params = [{transform_indices = @transform_0, window_bounds = array<i64: 1, 2048>}, {transform_indices = @transform_1, window_bounds = array<i64: 1, 2048>}]} {
    %c0 = arith.constant 0 : index
    %c0_0 = arith.constant 0 : index
    %0 = vector.load %arg1[%c0, %c0_0] : memref<1x2048xf32, #tpu.memory_space<vmem>>, vector<1x2048xf32>
    %cst = arith.constant 3.200000e+01 : f32
    %1 = vector.broadcast %cst : f32 to vector<1x2048xf32>
    %2 = arith.mulf %1, %0 : vector<1x2048xf32>
    %3 = math.ceil %2 : vector<1x2048xf32>
    %cst_1 = arith.constant 3.125000e-02 : f32
    %4 = vector.broadcast %cst_1 : f32 to vector<1x2048xf32>
    %5 = arith.mulf %3, %4 : vector<1x2048xf32>
    %c0_2 = arith.constant 0 : index
    %c0_3 = arith.constant 0 : index
    %6 = vector.load %arg2[%c0_2, %c0_3] : memref<1x2048xf32, #tpu.memory_space<vmem>>, vector<1x2048xf32>
    tpu.vector_store %arg2[%c0_2, %c0_3], %5 {strides = array<i32>} : memref<1x2048xf32, #tpu.memory_space<vmem>>, vector<1x2048xf32>,
    return
  }
  func.func @transform_0(%arg0: i32) -> (i32, i32) {
    %c0_i32 = arith.constant 0 : i32
    %c0_i32_0 = arith.constant 0 : i32
    return %arg0, %c0_i32 : i32, i32
  }
  func.func @transform_1(%arg0: i32) -> (i32, i32) {
    %c0_i32 = arith.constant 0 : i32
    %c0_i32_0 = arith.constant 0 : i32
    return %arg0, %c0_i32 : i32, i32
  }
}

</mosaic_0001>

<llo_original>
// kernel: tpu_custom_call.1
$region0: #{tpu_custom_call.1}
  #allocation0 [shape = 'u32[]', space=smem, size = 0x4, offset = 0x4, fixed_abs, tag = 'smem constant byte address 0x4 - core index']
  #allocation1 [shape = 'u32[144,128]{1,0:T(1,128)}', space=vmem, size = 0x12000, scoped, tag = 'internal scratch']
  %s0 = inlined_call_operand.hbm [shape: f32[1,2048], index: 0, kind: input, shape index: {}]
  %s1 = inlined_call_operand.hbm [shape: f32[1,2048], index: 1, kind: output, shape index: {}]
  %s2 = sld [smem:[#allocation0]]
  $region18: #{tpu_custom_call.1} parent=0
    _
  %s4 = ssub.s32 1, %s2
  %s5 = scalar_select 0, %s4, %s2
  $region1: #{tpu_custom_call.1} parent=0
    #allocation2 [shape = 'u8[8192]{0}', space=vmem, size = 0x2000, scoped, tag = 'input window, operand 0, single buffered']
    #allocation3 [shape = 's32[1]{0}', space=sflag, size = 0x4, scoped, tag = 'scoped memory for tpu_custom_call.1']
    #allocation4 [shape = 's32[1]{0}', space=sflag, size = 0x4, scoped, tag = 'scoped memory for tpu_custom_call.1']
    #allocation5 [shape = 'u8[8192]{0}', space=vmem, size = 0x2000, scoped, tag = 'output window, operand 0, single buffered']
    %6 = vsyncpa [#allocation3], 0
    %7 = vsyncpa [#allocation4], 0
    // Predicated region
    $region2: #{tpu_custom_call.1} parent=1 // pred_check
      _
    $region3: #{tpu_custom_call.1} parent=1 // pred_check_branch
      %9 = sbr.rel (0) target = $region5
    $region4: #{tpu_custom_call.1} parent=1 // pred_region
      %s11 = ssub.s32 256, 256
      %12 = vsyncadd [#allocation3], %s11
      %s14 = sshll.u32 [#allocation2], 4
      %s15 = int_to_ptr.vmem [resolvable:$true] %s14
      %17 = dma.hbm_to_vmem [thread:$0]  %s0, 256, %s15, [#allocation3]
    $region5: #{tpu_custom_call.1} parent=1 // pred_fallthru
      _
    // Predicated region
    $region6: #{tpu_custom_call.1} parent=1 // pred_check
      _
    $region7: #{tpu_custom_call.1} parent=1 // pred_check_branch
      %19 = sbr.rel (0) target = $region9
    $region8: #{tpu_custom_call.1} parent=1 // pred_region
      %20 = dma.done [#allocation3], 256
    $region9: #{tpu_custom_call.1} parent=1 // pred_fallthru
      _
    %v21 = vld [vmem:[#allocation2] sm:$0xff]
    %v22 = vld [vmem:[#allocation2 + $0x8] sm:$0xff]
    %v23 = vmul.f32 %v21, 32.0
    %v24 = vmul.f32 %v22, 32.0
    %v25 = vceil.f32 %v23
    %v26 = vceil.f32 %v24
    %v27 = vmul.f32 %v25, 0.03125
    %v28 = vmul.f32 %v26, 0.03125
    %29 = vst [vmem:[#allocation5] sm:$0xff] %v27
    %30 = vst [vmem:[#allocation5 + $0x8] sm:$0xff] %v28
    // Predicated region
    $region10: #{tpu_custom_call.1} parent=1 // pred_check
      _
    $region11: #{tpu_custom_call.1} parent=1 // pred_check_branch
      %32 = sbr.rel (0) target = $region13
    $region12: #{tpu_custom_call.1} parent=1 // pred_region
      %s34 = ssub.s32 256, 256
      %35 = vsyncadd [#allocation4], %s34
      %s37 = sshll.u32 [#allocation5], 4
      %s38 = int_to_ptr.vmem [resolvable:$true] %s37
      %40 = dma.vmem_to_hbm [thread:$0]  %s38, 256, %s1, [#allocation4]
    $region13: #{tpu_custom_call.1} parent=1 // pred_fallthru
      _
    // Predicated region
    $region14: #{tpu_custom_call.1} parent=1 // pred_check
      _
    $region15: #{tpu_custom_call.1} parent=1 // pred_check_branch
      %42 = sbr.rel (0) target = $region17
    $region16: #{tpu_custom_call.1} parent=1 // pred_region
      %43 = dma.done [#allocation4], 256
    $region17: #{tpu_custom_call.1} parent=1 // pred_fallthru
      _
    %44 = vsyncpa [#allocation3], 1
    %45 = vsyncpa [#allocation4], 1

</llo_original>
